<compile_context>
chip_gen: v6e
topology: v6e:2x2x1
jax: 0.10.0
libtpu: 0.0.40
codegen_flags: <defaults>
</compile_context>

<pallas_src>
import functools

import jax
import jax.numpy as jnp
from jax.experimental import pallas as pl
from jax.experimental.pallas import tpu as pltpu


HIDDEN = 20
IN_DIM = 2
OUT_DIM = 1
# Packed weight slab columns: [W1^T (2) | b1 (1) | W2^T (20) | b2 (1) | W3 (1) | b3 (1)]
SLAB_COLS = IN_DIM + 1 + HIDDEN + 1 + 1 + 1          # = 26
_C_B1 = IN_DIM                                        # 2
_C_W2 = _C_B1 + 1                                     # 3
_C_B2 = _C_W2 + HIDDEN                                # 23
_C_W3 = _C_B2 + 1                                     # 24
_C_B3 = _C_W3 + 1                                     # 25


def pinn_kernel(x_ref, t_ref, w_ref, o_ref):
    # Batch on lanes, features on sublanes.
    xb = x_ref[...]                                   # (1, TM)
    tb = t_ref[...]                                   # (1, TM)

    # Carve the packed weight slab with static slices (tiny, ~2 KB total).
    w1x = w_ref[:, 0:1]                               # (HIDDEN, 1)
    w1t = w_ref[:, 1:2]                               # (HIDDEN, 1)
    b1 = w_ref[:, _C_B1:_C_B1 + 1]                    # (HIDDEN, 1)
    w2t = w_ref[:, _C_W2:_C_W2 + HIDDEN]              # (HIDDEN, HIDDEN)
    b2 = w_ref[:, _C_B2:_C_B2 + 1]                    # (HIDDEN, 1)
    w3 = w_ref[:, _C_W3:_C_W3 + 1]                    # (HIDDEN, 1)
    b3 = w_ref[0:1, _C_B3:_C_B3 + 1]                  # (1, 1)

    # Layer 1 (K=2): pure VPU broadcast multiply-adds (MXU would be <2% used).
    h = w1x * xb + w1t * tb + b1                      # (HIDDEN, TM)
    h = jnp.tanh(h)                                   # EUP

    # Layer 2 (20x20): the only real matmul -> MXU, f32 accumulation.
    h = jnp.dot(w2t, h, preferred_element_type=jnp.float32) + b2
    h = jnp.tanh(h)                                   # (HIDDEN, TM)

    # Layer 3 (20 -> 1): broadcast multiply + sublane reduce (VPU + XLU).
    o = jnp.sum(w3 * h, axis=0, keepdims=True) + b3   # (1, TM)
    o_ref[...] = o.astype(o_ref.dtype)


def _tensorcores_per_chip():
    """Best-effort TC-per-chip detection (v7x has 2, v5e/v6e have 1)."""
    try:
        d = jax.devices()[0]
        if d.platform != "tpu":
            return 1
        kind = (getattr(d, "device_kind", "") or "").lower()
        if "v7" in kind or "7x" in kind:
            return 2
    except Exception:
        pass
    return 1


def _choose_tiling(n, cores):
    """Pick (tm, n_blocks, n_pad): fewest grid steps, tm <= 1024, even blocks on 2-TC chips."""
    n128 = pl.cdiv(n, 128) * 128
    if cores >= 2:
        half = pl.cdiv(n128 // 2, 128) * 128
        tm = min(1024, max(128, half))
    else:
        tm = min(1024, n128)
    n_blocks = pl.cdiv(n128, tm)
    if cores >= 2 and n_blocks % 2 == 1:
        n_blocks += 1                                  # keep both TensorCores busy
    return tm, n_blocks, n_blocks * tm


def _pinn_forward_impl(x, t, params):
    """x, t: (N, 1) float32.  Returns (N, 1) float32."""
    w1, b1, w2, b2, w3, b3 = params
    N = x.shape[0]

    cores = _tensorcores_per_chip()
    tm, n_blocks, n_pad = _choose_tiling(N, cores)

    # Feature-major rows: (1, N) with the batch dim on lanes (cheap reshape);
    # pad lanes so any batch size works (padded tail is sliced off below).
    xr = x.reshape(1, N).astype(jnp.float32)
    tr = t.reshape(1, N).astype(jnp.float32)
    if n_pad != N:
        xr = jnp.pad(xr, ((0, 0), (0, n_pad - N)))
        tr = jnp.pad(tr, ((0, 0), (0, n_pad - N)))

    # Pack all weights/biases (~500 f32) into one slab -> single tiny DMA.
    b3_col = jnp.zeros((HIDDEN, 1), jnp.float32).at[0, 0].set(b3.reshape(()))
    slab = jnp.concatenate(
        [w1.T.astype(jnp.float32),                     # (HIDDEN, 2)
         b1.reshape(HIDDEN, 1).astype(jnp.float32),    # (HIDDEN, 1)
         w2.T.astype(jnp.float32),                     # (HIDDEN, HIDDEN)
         b2.reshape(HIDDEN, 1).astype(jnp.float32),    # (HIDDEN, 1)
         w3.reshape(HIDDEN, 1).astype(jnp.float32),    # (HIDDEN, 1)
         b3_col],                                      # (HIDDEN, 1), b3 at [0,0]
        axis=1)                                        # (HIDDEN, SLAB_COLS)

    cost = pl.CostEstimate(
        flops=2 * N * (IN_DIM * HIDDEN + HIDDEN * HIDDEN + HIDDEN * OUT_DIM),
        transcendentals=2 * N * HIDDEN,
        bytes_accessed=4 * (3 * N) + 4 * HIDDEN * SLAB_COLS,
    )

    out = pl.pallas_call(
        pinn_kernel,
        out_shape=jax.ShapeDtypeStruct((1, n_pad), jnp.float32),
        grid_spec=pltpu.PrefetchScalarGridSpec(
            num_scalar_prefetch=0,
            grid=(n_blocks,),
            in_specs=[
                pl.BlockSpec((1, tm), lambda i: (0, i)),              # x row, lane-dense
                pl.BlockSpec((1, tm), lambda i: (0, i)),              # t row, lane-dense
                pl.BlockSpec((HIDDEN, SLAB_COLS), lambda i: (0, 0)),  # packed weights
            ],
            out_specs=pl.BlockSpec((1, tm), lambda i: (0, i)),
        ),
        compiler_params=pltpu.CompilerParams(
            dimension_semantics=("parallel",)),
        cost_estimate=cost,
    )(xr, tr, slab)

    # Padded tail lanes hold tanh-of-bias garbage; slice them off.
    return out[:, :N].reshape(N, OUT_DIM)


# Jit the whole wrapper: pad/reshape/pack/slice fuse with the pallas_call.
pinn_forward = jax.jit(_pinn_forward_impl)


def init_params(key):
    """Deterministic init mimicking PyTorch nn.Linear default (U[-1/sqrt(fan_in), +])."""
    def linear(key, fan_in, fan_out):
        kw, kb = jax.random.split(key)
        bound = 1.0 / jnp.sqrt(fan_in)
        w = jax.random.uniform(kw, (fan_in, fan_out), jnp.float32, -bound, bound)
        b = jax.random.uniform(kb, (1, fan_out), jnp.float32, -bound, bound)
        return w, b

    k1, k2, k3 = jax.random.split(key, 3)
    w1, b1 = linear(k1, IN_DIM, HIDDEN)
    w2, b2 = linear(k2, HIDDEN, HIDDEN)
    w3, b3 = linear(k3, HIDDEN, OUT_DIM)
    return (w1, b1, w2, b2, w3, b3)


def pinn_ref(x, t, params):
    w1, b1, w2, b2, w3, b3 = params
    h = jnp.concatenate([x, t], axis=1)
    h = jnp.tanh(h @ w1 + b1)
    h = jnp.tanh(h @ w2 + b2)
    return h @ w3 + b3


if __name__ == "__main__":
    key = jax.random.PRNGKey(0)
    kx, kt, kp = jax.random.split(key, 3)

    N = 1000  # matches the reference script; not a multiple of 128 -> exercises padding
    x = jax.random.uniform(kx, (N, 1), jnp.float32)
    t = jax.random.uniform(kt, (N, 1), jnp.float32)
    params = init_params(kp)

    out = pinn_forward(x, t, params)
    out = jax.block_until_ready(out)

    ref = pinn_ref(x, t, params)
    assert out.shape == (N, 1)
    assert jnp.allclose(out, ref, atol=1e-5, rtol=1e-5), "mismatch vs pure-JAX reference"

    print("KERNEL_OK")
</pallas_src>

<mosaic_0001>
module attributes {stable_mosaic.version = 11 : i64} {
  func.func @pinn_kernel(%arg0: i32, %arg1: memref<1x1024xf32, #tpu.memory_space<vmem>>, %arg2: memref<1x1024xf32, #tpu.memory_space<vmem>>, %arg3: memref<20x26xf32, #tpu.memory_space<vmem>>, %arg4: memref<1x1024xf32, #tpu.memory_space<vmem>>) attributes {dimension_semantics = [#tpu.dimension_semantics<parallel>], iteration_bounds = array<i64: 1>, scalar_prefetch = 0 : i64, scratch_operands = 0 : i64, tpu.core_type = #tpu.core_type<tc>, window_params = [{transform_indices = @transform_0, window_bounds = array<i64: 1, 1024>}, {transform_indices = @transform_1, window_bounds = array<i64: 1, 1024>}, {pipeline_mode = #tpu.pipeline_mode<synchronous>, transform_indices = @transform_2, window_bounds = array<i64: 20, 26>}, {transform_indices = @transform_3, window_bounds = array<i64: 1, 1024>}]} {
    %c0 = arith.constant 0 : index
    %c0_0 = arith.constant 0 : index
    %0 = vector.load %arg1[%c0, %c0_0] : memref<1x1024xf32, #tpu.memory_space<vmem>>, vector<1x1024xf32>
    %c0_1 = arith.constant 0 : index
    %c0_2 = arith.constant 0 : index
    %1 = vector.load %arg2[%c0_1, %c0_2] : memref<1x1024xf32, #tpu.memory_space<vmem>>, vector<1x1024xf32>
    %c0_3 = arith.constant 0 : index
    %c0_4 = arith.constant 0 : index
    %2 = vector.load %arg3[%c0_3, %c0_4] : memref<20x26xf32, #tpu.memory_space<vmem>>, vector<20x1xf32>
    %c0_5 = arith.constant 0 : index
    %c1 = arith.constant 1 : index
    %3 = vector.load %arg3[%c0_5, %c1] : memref<20x26xf32, #tpu.memory_space<vmem>>, vector<20x1xf32>
    %c0_6 = arith.constant 0 : index
    %c2 = arith.constant 2 : index
    %4 = vector.load %arg3[%c0_6, %c2] : memref<20x26xf32, #tpu.memory_space<vmem>>, vector<20x1xf32>
    %c0_7 = arith.constant 0 : index
    %c3 = arith.constant 3 : index
    %5 = vector.load %arg3[%c0_7, %c3] : memref<20x26xf32, #tpu.memory_space<vmem>>, vector<20x20xf32>
    %c0_8 = arith.constant 0 : index
    %c23 = arith.constant 23 : index
    %6 = vector.load %arg3[%c0_8, %c23] : memref<20x26xf32, #tpu.memory_space<vmem>>, vector<20x1xf32>
    %c0_9 = arith.constant 0 : index
    %c24 = arith.constant 24 : index
    %7 = vector.load %arg3[%c0_9, %c24] : memref<20x26xf32, #tpu.memory_space<vmem>>, vector<20x1xf32>
    %c0_10 = arith.constant 0 : index
    %c25 = arith.constant 25 : index
    %8 = vector.load %arg3[%c0_10, %c25] : memref<20x26xf32, #tpu.memory_space<vmem>>, vector<1x1xf32>
    %9 = vector.broadcast %2 : vector<20x1xf32> to vector<20x1024xf32>
    %10 = vector.broadcast %0 : vector<1x1024xf32> to vector<20x1024xf32>
    %11 = arith.mulf %9, %10 : vector<20x1024xf32>
    %12 = vector.broadcast %3 : vector<20x1xf32> to vector<20x1024xf32>
    %13 = vector.broadcast %1 : vector<1x1024xf32> to vector<20x1024xf32>
    %14 = arith.mulf %12, %13 : vector<20x1024xf32>
    %15 = arith.addf %11, %14 : vector<20x1024xf32>
    %16 = vector.broadcast %4 : vector<20x1xf32> to vector<20x1024xf32>
    %17 = arith.addf %15, %16 : vector<20x1024xf32>
    %18 = math.tanh %17 : vector<20x1024xf32>
    %cst = arith.constant dense<0.000000e+00> : vector<20x1024xf32>
    %19 = tpu.matmul %5, %18, %cst {dimension_numbers = #tpu.dot_dimension_numbers<[1], [0], [0], [1], [0, 0, 1, 1], [], []>} : vector<20x20xf32>, vector<20x1024xf32>, vector<20x1024xf32> -> vector<20x1024xf32>
    %20 = vector.broadcast %6 : vector<20x1xf32> to vector<20x1024xf32>
    %21 = arith.addf %19, %20 : vector<20x1024xf32>
    %22 = math.tanh %21 : vector<20x1024xf32>
    %23 = vector.broadcast %7 : vector<20x1xf32> to vector<20x1024xf32>
    %24 = arith.mulf %23, %22 : vector<20x1024xf32>
    %cst_11 = arith.constant dense<0.000000e+00> : vector<1024xf32>
    %25 = vector.multi_reduction <add>, %24, %cst_11 [0] : vector<20x1024xf32> to vector<1024xf32>
    %26 = vector.shape_cast %25 : vector<1024xf32> to vector<1x1024xf32>
    %27 = vector.broadcast %8 : vector<1x1xf32> to vector<1x1024xf32>
    %28 = arith.addf %26, %27 : vector<1x1024xf32>
    %c0_12 = arith.constant 0 : index
    %c0_13 = arith.constant 0 : index
    %29 = vector.load %arg4[%c0_12, %c0_13] : memref<1x1024xf32, #tpu.memory_space<vmem>>, vector<1x1024xf32>
    tpu.vector_store %arg4[%c0_12, %c0_13], %28 {strides = array<i32>} : memref<1x1024xf32, #tpu.memory_space<vmem>>, vector<1x1024xf32>,
    return
  }
  func.func @transform_0(%arg0: i32) -> (i32, i32) {
    %c0_i32 = arith.constant 0 : i32
    %c0_i32_0 = arith.constant 0 : i32
    return %c0_i32, %arg0 : i32, i32
  }
  func.func @transform_1(%arg0: i32) -> (i32, i32) {
    %c0_i32 = arith.constant 0 : i32
    %c0_i32_0 = arith.constant 0 : i32
    return %c0_i32, %arg0 : i32, i32
  }
  func.func @transform_2(%arg0: i32) -> (i32, i32) {
    %c0_i32 = arith.constant 0 : i32
    %c0_i32_0 = arith.constant 0 : i32
    %c0_i32_1 = arith.constant 0 : i32
    return %c0_i32, %c0_i32_0 : i32, i32
  }
  func.func @transform_3(%arg0: i32) -> (i32, i32) {
    %c0_i32 = arith.constant 0 : i32
    %c0_i32_0 = arith.constant 0 : i32
    return %c0_i32, %arg0 : i32, i32
  }
}

</mosaic_0001>

<llo_original>
// kernel: _pinn_forward_impl.1
$region0: #{_pinn_forward_impl.1}
  #allocation0 [shape = 'u32[]', space=smem, size = 0x4, offset = 0x4, fixed_abs, tag = 'smem constant byte address 0x4 - core index']
  #allocation1 [shape = 'u32[144,128]{1,0:T(1,128)}', space=vmem, size = 0x12000, scoped, tag = 'internal scratch']
  %s0 = inlined_call_operand.vmem [shape: f32[1,1024], index: 0, kind: input, shape index: {}]
  %s1 = inlined_call_operand.vmem [shape: f32[1,1024], index: 1, kind: input, shape index: {}]
  %s2 = inlined_call_operand.vmem [shape: f32[20,26], index: 2, kind: input, shape index: {}]
  %s3 = inlined_call_operand.vmem [shape: f32[1,1024], index: 3, kind: output, shape index: {}]
  %s4 = sld [smem:[#allocation0]]
  $region22: #{_pinn_forward_impl.1} parent=0
    _
  %s6 = ssub.s32 1, %s4
  %s7 = scalar_select 0, %s6, %s4
  // Predicated region
  $region2: #{_pinn_forward_impl.1} parent=0 // pred_check
    _
  $region3: #{_pinn_forward_impl.1} parent=0 // pred_check_branch
    %9 = sbr.rel (0) target = $region5
  $region4: #{_pinn_forward_impl.1} parent=0 // pred_region
    _
  $region5: #{_pinn_forward_impl.1} parent=0 // pred_fallthru
    _
  // Predicated region
  $region6: #{_pinn_forward_impl.1} parent=0 // pred_check
    _
  $region7: #{_pinn_forward_impl.1} parent=0 // pred_check_branch
    %11 = sbr.rel (0) target = $region9
  $region8: #{_pinn_forward_impl.1} parent=0 // pred_region
    _
  $region9: #{_pinn_forward_impl.1} parent=0 // pred_fallthru
    _
  // Predicated region
  $region10: #{_pinn_forward_impl.1} parent=0 // pred_check
    _
  $region11: #{_pinn_forward_impl.1} parent=0 // pred_check_branch
    %13 = sbr.rel (0) target = $region13
  $region12: #{_pinn_forward_impl.1} parent=0 // pred_region
    _
  $region13: #{_pinn_forward_impl.1} parent=0 // pred_fallthru
    _
  %v14 = vld [vmem:[%s0] sm:$0xff]
  %v15 = vld [vmem:[%s1] sm:$0xff]
  %v16 = vld [vmem:[%s2] sm:$0xff]
  %v17 = vld [vmem:[%s2 + $0x8] sm:$0xff]
  %v18 = vld [vmem:[%s2 + $0x10] sm:$0xf]
  %v19 = vld [vmem:[%s2] sm:$0x1]
  %21 = vset.pattern.permute.xlu0 0
  %22 = vperm.xlu0 %21, %v16
  %v23 = vpop.permute.xlu0 %22
  %26 = vset.pattern.permute.xlu0 0
  %27 = vperm.xlu0 %26, %v17
  %v28 = vpop.permute.xlu0 %27
  %31 = vset.pattern.permute.xlu0 0
  %32 = vperm.xlu0 %31, %v18
  %v33 = vpop.permute.xlu0 %32
  %v36 = vlaneseq
  %v37 = vshrl.u32 %v36, 7
  %v38 = vsub.s32 0, %v37
  %v39 = vrot.slane %v14, %v38
  %v40 = vlaneseq
  %v41 = vshrl.u32 %v40, 7
  %v42 = vsub.s32 1, %v41
  %v43 = vrot.slane %v14, %v42
  %v44 = vlaneseq
  %v45 = vshrl.u32 %v44, 7
  %v46 = vsub.s32 2, %v45
  %v47 = vrot.slane %v14, %v46
  %v48 = vlaneseq
  %v49 = vshrl.u32 %v48, 7
  %v50 = vsub.s32 3, %v49
  %v51 = vrot.slane %v14, %v50
  %v52 = vlaneseq
  %v53 = vshrl.u32 %v52, 7
  %v54 = vsub.s32 4, %v53
  %v55 = vrot.slane %v14, %v54
  %v56 = vlaneseq
  %v57 = vshrl.u32 %v56, 7
  %v58 = vsub.s32 5, %v57
  %v59 = vrot.slane %v14, %v58
  %v60 = vlaneseq
  %v61 = vshrl.u32 %v60, 7
  %v62 = vsub.s32 6, %v61
  %v63 = vrot.slane %v14, %v62
  %v64 = vlaneseq
  %v65 = vshrl.u32 %v64, 7
  %v66 = vsub.s32 7, %v65
  %v67 = vrot.slane %v14, %v66
  %v76 = vmul.f32 %v23, %v39
  %v77 = vmul.f32 %v23, %v43
  %v78 = vmul.f32 %v23, %v47
  %v79 = vmul.f32 %v23, %v51
  %v80 = vmul.f32 %v23, %v55
  %v81 = vmul.f32 %v23, %v59
  %v82 = vmul.f32 %v23, %v63
  %v83 = vmul.f32 %v23, %v67
  %v84 = vmul.f32 %v28, %v39
  %v85 = vmul.f32 %v28, %v43
  %v86 = vmul.f32 %v28, %v47
  %v87 = vmul.f32 %v28, %v51
  %v88 = vmul.f32 %v28, %v55
  %v89 = vmul.f32 %v28, %v59
  %v90 = vmul.f32 %v28, %v63
  %v91 = vmul.f32 %v28, %v67
  %v92 = vmul.f32 %v33, %v39
  %v93 = vmul.f32 %v33, %v43
  %v94 = vmul.f32 %v33, %v47
  %v95 = vmul.f32 %v33, %v51
  %v96 = vmul.f32 %v33, %v55
  %v97 = vmul.f32 %v33, %v59
  %v98 = vmul.f32 %v33, %v63
  %v99 = vmul.f32 %v33, %v67
  %100 = vset.pattern.permute.xlu0 1
  %101 = vperm.xlu0 %100, %v16
  %v102 = vpop.permute.xlu0 %101
  %104 = vset.pattern.permute.xlu0 1
  %105 = vperm.xlu0 %104, %v17
  %v106 = vpop.permute.xlu0 %105
  %108 = vset.pattern.permute.xlu0 1
  %109 = vperm.xlu0 %108, %v18
  %v110 = vpop.permute.xlu0 %109
  %v113 = vlaneseq
  %v114 = vshrl.u32 %v113, 7
  %v115 = vsub.s32 0, %v114
  %v116 = vrot.slane %v15, %v115
  %v117 = vlaneseq
  %v118 = vshrl.u32 %v117, 7
  %v119 = vsub.s32 1, %v118
  %v120 = vrot.slane %v15, %v119
  %v121 = vlaneseq
  %v122 = vshrl.u32 %v121, 7
  %v123 = vsub.s32 2, %v122
  %v124 = vrot.slane %v15, %v123
  %v125 = vlaneseq
  %v126 = vshrl.u32 %v125, 7
  %v127 = vsub.s32 3, %v126
  %v128 = vrot.slane %v15, %v127
  %v129 = vlaneseq
  %v130 = vshrl.u32 %v129, 7
  %v131 = vsub.s32 4, %v130
  %v132 = vrot.slane %v15, %v131
  %v133 = vlaneseq
  %v134 = vshrl.u32 %v133, 7
  %v135 = vsub.s32 5, %v134
  %v136 = vrot.slane %v15, %v135
  %v137 = vlaneseq
  %v138 = vshrl.u32 %v137, 7
  %v139 = vsub.s32 6, %v138
  %v140 = vrot.slane %v15, %v139
  %v141 = vlaneseq
  %v142 = vshrl.u32 %v141, 7
  %v143 = vsub.s32 7, %v142
  %v144 = vrot.slane %v15, %v143
  %v153 = vmul.f32 %v102, %v116
  %v154 = vmul.f32 %v102, %v120
  %v155 = vmul.f32 %v102, %v124
  %v156 = vmul.f32 %v102, %v128
  %v157 = vmul.f32 %v102, %v132
  %v158 = vmul.f32 %v102, %v136
  %v159 = vmul.f32 %v102, %v140
  %v160 = vmul.f32 %v102, %v144
  %v161 = vmul.f32 %v106, %v116
  %v162 = vmul.f32 %v106, %v120
  %v163 = vmul.f32 %v106, %v124
  %v164 = vmul.f32 %v106, %v128
  %v165 = vmul.f32 %v106, %v132
  %v166 = vmul.f32 %v106, %v136
  %v167 = vmul.f32 %v106, %v140
  %v168 = vmul.f32 %v106, %v144
  %v169 = vmul.f32 %v110, %v116
  %v170 = vmul.f32 %v110, %v120
  %v171 = vmul.f32 %v110, %v124
  %v172 = vmul.f32 %v110, %v128
  %v173 = vmul.f32 %v110, %v132
  %v174 = vmul.f32 %v110, %v136
  %v175 = vmul.f32 %v110, %v140
  %v176 = vmul.f32 %v110, %v144
  %v177 = vadd.f32 %v76, %v153
  %v178 = vadd.f32 %v77, %v154
  %v179 = vadd.f32 %v78, %v155
  %v180 = vadd.f32 %v79, %v156
  %v181 = vadd.f32 %v80, %v157
  %v182 = vadd.f32 %v81, %v158
  %v183 = vadd.f32 %v82, %v159
  %v184 = vadd.f32 %v83, %v160
  %v185 = vadd.f32 %v84, %v161
  %v186 = vadd.f32 %v85, %v162
  %v187 = vadd.f32 %v86, %v163
  %v188 = vadd.f32 %v87, %v164
  %v189 = vadd.f32 %v88, %v165
  %v190 = vadd.f32 %v89, %v166
  %v191 = vadd.f32 %v90, %v167
  %v192 = vadd.f32 %v91, %v168
  %v193 = vadd.f32 %v92, %v169
  %v194 = vadd.f32 %v93, %v170
  %v195 = vadd.f32 %v94, %v171
  %v196 = vadd.f32 %v95, %v172
  %v197 = vadd.f32 %v96, %v173
  %v198 = vadd.f32 %v97, %v174
  %v199 = vadd.f32 %v98, %v175
  %v200 = vadd.f32 %v99, %v176
  %201 = vset.pattern.permute.xlu0 2
  %202 = vperm.xlu0 %201, %v16
  %v203 = vpop.permute.xlu0 %202
  %205 = vset.pattern.permute.xlu0 2
  %206 = vperm.xlu0 %205, %v17
  %v207 = vpop.permute.xlu0 %206
  %209 = vset.pattern.permute.xlu0 2
  %210 = vperm.xlu0 %209, %v18
  %v211 = vpop.permute.xlu0 %210
  %v213 = vadd.f32 %v177, %v203
  %v214 = vadd.f32 %v178, %v203
  %v215 = vadd.f32 %v179, %v203
  %v216 = vadd.f32 %v180, %v203
  %v217 = vadd.f32 %v181, %v203
  %v218 = vadd.f32 %v182, %v203
  %v219 = vadd.f32 %v183, %v203
  %v220 = vadd.f32 %v184, %v203
  %v221 = vadd.f32 %v185, %v207
  %v222 = vadd.f32 %v186, %v207
  %v223 = vadd.f32 %v187, %v207
  %v224 = vadd.f32 %v188, %v207
  %v225 = vadd.f32 %v189, %v207
  %v226 = vadd.f32 %v190, %v207
  %v227 = vadd.f32 %v191, %v207
  %v228 = vadd.f32 %v192, %v207
  %v229 = vadd.f32 %v193, %v211
  %v230 = vadd.f32 %v194, %v211
  %v231 = vadd.f32 %v195, %v211
  %v232 = vadd.f32 %v196, %v211
  %v233 = vadd.f32 %v197, %v211
  %v234 = vadd.f32 %v198, %v211
  %v235 = vadd.f32 %v199, %v211
  %v236 = vadd.f32 %v200, %v211
  %v237 = vtanh.pop %v213
  %v238 = vtanh.pop %v214
  %v239 = vtanh.pop %v215
  %v240 = vtanh.pop %v216
  %v241 = vtanh.pop %v217
  %v242 = vtanh.pop %v218
  %v243 = vtanh.pop %v219
  %v244 = vtanh.pop %v220
  %v245 = vtanh.pop %v221
  %v246 = vtanh.pop %v222
  %v247 = vtanh.pop %v223
  %v248 = vtanh.pop %v224
  %v249 = vtanh.pop %v225
  %v250 = vtanh.pop %v226
  %v251 = vtanh.pop %v227
  %v252 = vtanh.pop %v228
  %v253 = vtanh.pop %v229
  %v254 = vtanh.pop %v230
  %v255 = vtanh.pop %v231
  %v256 = vtanh.pop %v232
  %v257 = vtanh.pop %v233
  %v258 = vtanh.pop %v234
  %v259 = vtanh.pop %v235
  %v260 = vtanh.pop %v236
  %261 = vset.pattern.permute.xlu0 23
  %262 = vperm.xlu0 %261, %v16
  %v263 = vpop.permute.xlu0 %262
  %265 = vset.pattern.permute.xlu0 23
  %266 = vperm.xlu0 %265, %v17
  %v267 = vpop.permute.xlu0 %266
  %269 = vset.pattern.permute.xlu0 23
  %270 = vperm.xlu0 %269, %v18
  %v271 = vpop.permute.xlu0 %270
  %273 = vrot.lane.b32.xlu0 %v16, 125
  %v274 = vpop.permute.xlu0 %273
  %275 = vrot.lane.b32.xlu0 %v17, 125
  %v276 = vpop.permute.xlu0 %275
  %277 = vrot.lane.b32.xlu0 %v18, 125
  %v278 = vpop.permute.xlu0 %277
  %vm279 = vcmask 162816
  %v280 = vsel %vm279, %v274, 0
  %v282 = vsel %vm279, %v276, 0
  %v284 = vsel %vm279, %v278, 0
  %vm286 = vcmask 1043456
  %v288 = vsel %vm286, %v253, 0
  %v291 = vsel %vm286, %v254, 0
  %v294 = vsel %vm286, %v255, 0
  %v297 = vsel %vm286, %v256, 0
  %v300 = vsel %vm286, %v257, 0
  %v303 = vsel %vm286, %v258, 0
  %v306 = vsel %vm286, %v259, 0
  %v309 = vsel %vm286, %v260, 0
  %311 = vmatprep.subr.mxu0 0.0
  %312 = vmatpush1.msra.mxu0 0.0
  %313 = vmatprep.subr.mxu0 0.0
  %314 = vmatpush1.msra.mxu0 0.0
  %315 = vmatprep.subr.mxu0 0.0
  %316 = vmatpush1.msra.mxu0 0.0
  %317 = vmatprep.subr.mxu0 0.0
  %318 = vmatpush1.msra.mxu0 0.0
  %319 = vmatprep.subr.mxu0 0.0
  %320 = vmatpush1.msra.mxu0 0.0
  %321 = vmatprep.subr.mxu0 0.0
  %322 = vmatpush1.msra.mxu0 0.0
  %323 = vmatprep.subr.mxu0 0.0
  %324 = vmatpush1.msra.mxu0 0.0
  %325 = vmatprep.subr.mxu0 0.0
  %326 = vmatpush1.msra.mxu0 0.0
  %327 = vmatprep.subr.mxu0 0.0
  %328 = vmatpush1.msra.mxu0 0.0
  %329 = vmatprep.subr.mxu0 0.0
  %330 = vmatpush1.msra.mxu0 0.0
  %331 = vmatprep.subr.mxu0 0.0
  %332 = vmatpush1.msra.mxu0 0.0
  %333 = vmatprep.subr.mxu0 0.0
  %334 = vmatpush1.msra.mxu0 0.0
  %335 = vmatprep.subr.mxu0 0.0
  %336 = vmatpush1.msra.mxu0 0.0
  %337 = vmatprep.subr.mxu0 %v291
  %338 = vmatpush1.msra.mxu0 %v288
  %339 = vmatprep.subr.mxu0 %v246
  %340 = vmatpush1.msra.mxu0 %v245
  %341 = vmatprep.subr.mxu0 %v238
  %342 = vmatpush1.msra.mxu0 %v237
  %343 = vmatprep.subr.mxu0 0.0
  %344 = vmatpush2.msra.mxu0 0.0
  %345 = vmatprep.subr.mxu0 0.0
  %346 = vmatpush2.msra.mxu0 0.0
  %347 = vmatprep.subr.mxu0 0.0
  %348 = vmatpush2.msra.mxu0 0.0
  %349 = vmatprep.subr.mxu0 0.0
  %350 = vmatpush2.msra.mxu0 0.0
  %351 = vmatprep.subr.mxu0 0.0
  %352 = vmatpush2.msra.mxu0 0.0
  %353 = vmatprep.subr.mxu0 0.0
  %354 = vmatpush2.msra.mxu0 0.0
  %355 = vmatprep.subr.mxu0 0.0
  %356 = vmatpush2.msra.mxu0 0.0
  %357 = vmatprep.subr.mxu0 0.0
  %358 = vmatpush2.msra.mxu0 0.0
  %359 = vmatprep.subr.mxu0 0.0
  %360 = vmatpush2.msra.mxu0 0.0
  %361 = vmatprep.subr.mxu0 0.0
  %362 = vmatpush2.msra.mxu0 0.0
  %363 = vmatprep.subr.mxu0 0.0
  %364 = vmatpush2.msra.mxu0 0.0
  %365 = vmatprep.subr.mxu0 0.0
  %366 = vmatpush2.msra.mxu0 0.0
  %367 = vmatprep.subr.mxu0 0.0
  %368 = vmatpush2.msra.mxu0 0.0
  %369 = vmatprep.subr.mxu0 0.0
  %370 = vmatpush2.msra.mxu0 0.0
  %371 = vmatprep.subr.mxu0 0.0
  %372 = vmatpush2.msra.mxu0 0.0
  %373 = vmatprep.subr.mxu0 0.0
  %374 = vmatpush2.msra.mxu0 0.0
  %375 = vmatprep.mubr.f32.mxu0 0.0
  %376 = vmatmul.mubr.f32.gmra.mxu0 %v280
  %v377 = vpop.f32.mrf.mxu0
  %v378 = vadd.f32 %v263, %v377
  %v379 = vpop.f32.mrf.mxu0
  %v380 = vadd.f32 %v263, %v379
  %381 = vmatprep.mubr.f32.mxu0 0.0
  %382 = vmatmul.mubr.f32.gmra.mxu0 %v282
  %v383 = vpop.f32.mrf.mxu0
  %v384 = vadd.f32 %v267, %v383
  %v385 = vpop.f32.mrf.mxu0
  %v386 = vadd.f32 %v267, %v385
  %387 = vmatprep.mubr.f32.mxu0 0.0
  %388 = vmatmul.mubr.f32.gmra.mxu0 %v284
  %v389 = vpop.f32.mrf.mxu0
  %v390 = vadd.f32 %v271, %v389
  %v391 = vpop.f32.mrf.mxu0
  %v392 = vadd.f32 %v271, %v391
  %393 = vdwg.mxu0
  %394 = vmatprep.subr.mxu0 0.0
  %395 = vmatpush1.msra.mxu0 0.0
  %396 = vmatprep.subr.mxu0 0.0
  %397 = vmatpush1.msra.mxu0 0.0
  %398 = vmatprep.subr.mxu0 0.0
  %399 = vmatpush1.msra.mxu0 0.0
  %400 = vmatprep.subr.mxu0 0.0
  %401 = vmatpush1.msra.mxu0 0.0
  %402 = vmatprep.subr.mxu0 0.0
  %403 = vmatpush1.msra.mxu0 0.0
  %404 = vmatprep.subr.mxu0 0.0
  %405 = vmatpush1.msra.mxu0 0.0
  %406 = vmatprep.subr.mxu0 0.0
  %407 = vmatpush1.msra.mxu0 0.0
  %408 = vmatprep.subr.mxu0 0.0
  %409 = vmatpush1.msra.mxu0 0.0
  %410 = vmatprep.subr.mxu0 0.0
  %411 = vmatpush1.msra.mxu0 0.0
  %412 = vmatprep.subr.mxu0 0.0
  %413 = vmatpush1.msra.mxu0 0.0
  %414 = vmatprep.subr.mxu0 0.0
  %415 = vmatpush1.msra.mxu0 0.0
  %416 = vmatprep.subr.mxu0 0.0
  %417 = vmatpush1.msra.mxu0 0.0
  %418 = vmatprep.subr.mxu0 0.0
  %419 = vmatpush1.msra.mxu0 0.0
  %420 = vmatprep.subr.mxu0 %v297
  %421 = vmatpush1.msra.mxu0 %v294
  %422 = vmatprep.subr.mxu0 %v248
  %423 = vmatpush1.msra.mxu0 %v247
  %424 = vmatprep.subr.mxu0 %v240
  %425 = vmatpush1.msra.mxu0 %v239
  %426 = vmatprep.subr.mxu0 0.0
  %427 = vmatpush2.msra.mxu0 0.0
  %428 = vmatprep.subr.mxu0 0.0
  %429 = vmatpush2.msra.mxu0 0.0
  %430 = vmatprep.subr.mxu0 0.0
  %431 = vmatpush2.msra.mxu0 0.0
  %432 = vmatprep.subr.mxu0 0.0
  %433 = vmatpush2.msra.mxu0 0.0
  %434 = vmatprep.subr.mxu0 0.0
  %435 = vmatpush2.msra.mxu0 0.0
  %436 = vmatprep.subr.mxu0 0.0
  %437 = vmatpush2.msra.mxu0 0.0
  %438 = vmatprep.subr.mxu0 0.0
  %439 = vmatpush2.msra.mxu0 0.0
  %440 = vmatprep.subr.mxu0 0.0
  %441 = vmatpush2.msra.mxu0 0.0
  %442 = vmatprep.subr.mxu0 0.0
  %443 = vmatpush2.msra.mxu0 0.0
  %444 = vmatprep.subr.mxu0 0.0
  %445 = vmatpush2.msra.mxu0 0.0
  %446 = vmatprep.subr.mxu0 0.0
  %447 = vmatpush2.msra.mxu0 0.0
  %448 = vmatprep.subr.mxu0 0.0
  %449 = vmatpush2.msra.mxu0 0.0
  %450 = vmatprep.subr.mxu0 0.0
  %451 = vmatpush2.msra.mxu0 0.0
  %452 = vmatprep.subr.mxu0 0.0
  %453 = vmatpush2.msra.mxu0 0.0
  %454 = vmatprep.subr.mxu0 0.0
  %455 = vmatpush2.msra.mxu0 0.0
  %456 = vmatprep.subr.mxu0 0.0
  %457 = vmatpush2.msra.mxu0 0.0
  %458 = vmatprep.mubr.f32.mxu0 0.0
  %459 = vmatmul.mubr.f32.gmra.mxu0 %v280
  %v460 = vpop.f32.mrf.mxu0
  %v461 = vadd.f32 %v263, %v460
  %v462 = vpop.f32.mrf.mxu0
  %v463 = vadd.f32 %v263, %v462
  %464 = vmatprep.mubr.f32.mxu0 0.0
  %465 = vmatmul.mubr.f32.gmra.mxu0 %v282
  %v466 = vpop.f32.mrf.mxu0
  %v467 = vadd.f32 %v267, %v466
  %v468 = vpop.f32.mrf.mxu0
  %v469 = vadd.f32 %v267, %v468
  %470 = vmatprep.mubr.f32.mxu0 0.0
  %471 = vmatmul.mubr.f32.gmra.mxu0 %v284
  %v472 = vpop.f32.mrf.mxu0
  %v473 = vadd.f32 %v271, %v472
  %v474 = vpop.f32.mrf.mxu0
  %v475 = vadd.f32 %v271, %v474
  %476 = vdwg.mxu0
  %477 = vmatprep.subr.mxu0 0.0
  %478 = vmatpush1.msra.mxu0 0.0
  %479 = vmatprep.subr.mxu0 0.0
  %480 = vmatpush1.msra.mxu0 0.0
  %481 = vmatprep.subr.mxu0 0.0
  %482 = vmatpush1.msra.mxu0 0.0
  %483 = vmatprep.subr.mxu0 0.0
  %484 = vmatpush1.msra.mxu0 0.0
  %485 = vmatprep.subr.mxu0 0.0
  %486 = vmatpush1.msra.mxu0 0.0
  %487 = vmatprep.subr.mxu0 0.0
  %488 = vmatpush1.msra.mxu0 0.0
  %489 = vmatprep.subr.mxu0 0.0
  %490 = vmatpush1.msra.mxu0 0.0
  %491 = vmatprep.subr.mxu0 0.0
  %492 = vmatpush1.msra.mxu0 0.0
  %493 = vmatprep.subr.mxu0 0.0
  %494 = vmatpush1.msra.mxu0 0.0
  %495 = vmatprep.subr.mxu0 0.0
  %496 = vmatpush1.msra.mxu0 0.0
  %497 = vmatprep.subr.mxu0 0.0
  %498 = vmatpush1.msra.mxu0 0.0
  %499 = vmatprep.subr.mxu0 0.0
  %500 = vmatpush1.msra.mxu0 0.0
  %501 = vmatprep.subr.mxu0 0.0
  %502 = vmatpush1.msra.mxu0 0.0
  %503 = vmatprep.subr.mxu0 %v303
  %504 = vmatpush1.msra.mxu0 %v300
  %505 = vmatprep.subr.mxu0 %v250
  %506 = vmatpush1.msra.mxu0 %v249
  %507 = vmatprep.subr.mxu0 %v242
  %508 = vmatpush1.msra.mxu0 %v241
  %509 = vmatprep.subr.mxu0 0.0
  %510 = vmatpush2.msra.mxu0 0.0
  %511 = vmatprep.subr.mxu0 0.0
  %512 = vmatpush2.msra.mxu0 0.0
  %513 = vmatprep.subr.mxu0 0.0
  %514 = vmatpush2.msra.mxu0 0.0
  %515 = vmatprep.subr.mxu0 0.0
  %516 = vmatpush2.msra.mxu0 0.0
  %517 = vmatprep.subr.mxu0 0.0
  %518 = vmatpush2.msra.mxu0 0.0
  %519 = vmatprep.subr.mxu0 0.0
  %520 = vmatpush2.msra.mxu0 0.0
  %521 = vmatprep.subr.mxu0 0.0
  %522 = vmatpush2.msra.mxu0 0.0
  %523 = vmatprep.subr.mxu0 0.0
  %524 = vmatpush2.msra.mxu0 0.0
  %525 = vmatprep.subr.mxu0 0.0
  %526 = vmatpush2.msra.mxu0 0.0
  %527 = vmatprep.subr.mxu0 0.0
  %528 = vmatpush2.msra.mxu0 0.0
  %529 = vmatprep.subr.mxu0 0.0
  %530 = vmatpush2.msra.mxu0 0.0
  %531 = vmatprep.subr.mxu0 0.0
  %532 = vmatpush2.msra.mxu0 0.0
  %533 = vmatprep.subr.mxu0 0.0
  %534 = vmatpush2.msra.mxu0 0.0
  %535 = vmatprep.subr.mxu0 0.0
  %536 = vmatpush2.msra.mxu0 0.0
  %537 = vmatprep.subr.mxu0 0.0
  %538 = vmatpush2.msra.mxu0 0.0
  %539 = vmatprep.subr.mxu0 0.0
  %540 = vmatpush2.msra.mxu0 0.0
  %541 = vmatprep.mubr.f32.mxu0 0.0
  %542 = vmatmul.mubr.f32.gmra.mxu0 %v280
  %v543 = vpop.f32.mrf.mxu0
  %v544 = vadd.f32 %v263, %v543
  %v545 = vpop.f32.mrf.mxu0
  %v546 = vadd.f32 %v263, %v545
  %547 = vmatprep.mubr.f32.mxu0 0.0
  %548 = vmatmul.mubr.f32.gmra.mxu0 %v282
  %v549 = vpop.f32.mrf.mxu0
  %v550 = vadd.f32 %v267, %v549
  %v551 = vpop.f32.mrf.mxu0
  %v552 = vadd.f32 %v267, %v551
  %553 = vmatprep.mubr.f32.mxu0 0.0
  %554 = vmatmul.mubr.f32.gmra.mxu0 %v284
  %v555 = vpop.f32.mrf.mxu0
  %v556 = vadd.f32 %v271, %v555
  %v557 = vpop.f32.mrf.mxu0
  %v558 = vadd.f32 %v271, %v557
  %559 = vdwg.mxu0
  %560 = vmatprep.subr.mxu0 0.0
  %561 = vmatpush1.msra.mxu0 0.0
  %562 = vmatprep.subr.mxu0 0.0
  %563 = vmatpush1.msra.mxu0 0.0
  %564 = vmatprep.subr.mxu0 0.0
  %565 = vmatpush1.msra.mxu0 0.0
  %566 = vmatprep.subr.mxu0 0.0
  %567 = vmatpush1.msra.mxu0 0.0
  %568 = vmatprep.subr.mxu0 0.0
  %569 = vmatpush1.msra.mxu0 0.0
  %570 = vmatprep.subr.mxu0 0.0
  %571 = vmatpush1.msra.mxu0 0.0
  %572 = vmatprep.subr.mxu0 0.0
  %573 = vmatpush1.msra.mxu0 0.0
  %574 = vmatprep.subr.mxu0 0.0
  %575 = vmatpush1.msra.mxu0 0.0
  %576 = vmatprep.subr.mxu0 0.0
  %577 = vmatpush1.msra.mxu0 0.0
  %578 = vmatprep.subr.mxu0 0.0
  %579 = vmatpush1.msra.mxu0 0.0
  %580 = vmatprep.subr.mxu0 0.0
  %581 = vmatpush1.msra.mxu0 0.0
  %582 = vmatprep.subr.mxu0 0.0
  %583 = vmatpush1.msra.mxu0 0.0
  %584 = vmatprep.subr.mxu0 0.0
  %585 = vmatpush1.msra.mxu0 0.0
  %586 = vmatprep.subr.mxu0 %v309
  %587 = vmatpush1.msra.mxu0 %v306
  %588 = vmatprep.subr.mxu0 %v252
  %589 = vmatpush1.msra.mxu0 %v251
  %590 = vmatprep.subr.mxu0 %v244
  %591 = vmatpush1.msra.mxu0 %v243
  %592 = vmatprep.subr.mxu0 0.0
  %593 = vmatpush2.msra.mxu0 0.0
  %594 = vmatprep.subr.mxu0 0.0
  %595 = vmatpush2.msra.mxu0 0.0
  %596 = vmatprep.subr.mxu0 0.0
  %597 = vmatpush2.msra.mxu0 0.0
  %598 = vmatprep.subr.mxu0 0.0
  %599 = vmatpush2.msra.mxu0 0.0
  %600 = vmatprep.subr.mxu0 0.0
  %601 = vmatpush2.msra.mxu0 0.0
  %602 = vmatprep.subr.mxu0 0.0
  %603 = vmatpush2.msra.mxu0 0.0
  %604 = vmatprep.subr.mxu0 0.0
  %605 = vmatpush2.msra.mxu0 0.0
  %606 = vmatprep.subr.mxu0 0.0
  %607 = vmatpush2.msra.mxu0 0.0
  %608 = vmatprep.subr.mxu0 0.0
  %609 = vmatpush2.msra.mxu0 0.0
  %610 = vmatprep.subr.mxu0 0.0
  %611 = vmatpush2.msra.mxu0 0.0
  %612 = vmatprep.subr.mxu0 0.0
  %613 = vmatpush2.msra.mxu0 0.0
  %614 = vmatprep.subr.mxu0 0.0
  %615 = vmatpush2.msra.mxu0 0.0
  %616 = vmatprep.subr.mxu0 0.0
  %617 = vmatpush2.msra.mxu0 0.0
  %618 = vmatprep.subr.mxu0 0.0
  %619 = vmatpush2.msra.mxu0 0.0
  %620 = vmatprep.subr.mxu0 0.0
  %621 = vmatpush2.msra.mxu0 0.0
  %622 = vmatprep.subr.mxu0 0.0
  %623 = vmatpush2.msra.mxu0 0.0
  %624 = vmatprep.mubr.f32.mxu0 0.0
  %625 = vmatmul.mubr.f32.gmra.mxu0 %v280
  %v626 = vpop.f32.mrf.mxu0
  %v627 = vadd.f32 %v263, %v626
  %v628 = vpop.f32.mrf.mxu0
  %v629 = vadd.f32 %v263, %v628
  %630 = vmatprep.mubr.f32.mxu0 0.0
  %631 = vmatmul.mubr.f32.gmra.mxu0 %v282
  %v632 = vpop.f32.mrf.mxu0
  %v633 = vadd.f32 %v267, %v632
  %v634 = vpop.f32.mrf.mxu0
  %v635 = vadd.f32 %v267, %v634
  %636 = vmatprep.mubr.f32.mxu0 0.0
  %637 = vmatmul.mubr.f32.gmra.mxu0 %v284
  %v638 = vpop.f32.mrf.mxu0
  %v639 = vadd.f32 %v271, %v638
  %v640 = vpop.f32.mrf.mxu0
  %v641 = vadd.f32 %v271, %v640
  %642 = vdwg.mxu0
  %v643 = vtanh.pop %v378
  %v644 = vtanh.pop %v380
  %v645 = vtanh.pop %v461
  %v646 = vtanh.pop %v463
  %v647 = vtanh.pop %v544
  %v648 = vtanh.pop %v546
  %v649 = vtanh.pop %v627
  %v650 = vtanh.pop %v629
  %v651 = vtanh.pop %v384
  %v652 = vtanh.pop %v386
  %v653 = vtanh.pop %v467
  %v654 = vtanh.pop %v469
  %v655 = vtanh.pop %v550
  %v656 = vtanh.pop %v552
  %v657 = vtanh.pop %v633
  %v658 = vtanh.pop %v635
  %v659 = vtanh.pop %v390
  %v660 = vtanh.pop %v392
  %v661 = vtanh.pop %v473
  %v662 = vtanh.pop %v475
  %v663 = vtanh.pop %v556
  %v664 = vtanh.pop %v558
  %v665 = vtanh.pop %v639
  %v666 = vtanh.pop %v641
  %667 = vset.pattern.permute.xlu0 24
  %668 = vperm.xlu0 %667, %v16
  %v669 = vpop.permute.xlu0 %668
  %671 = vset.pattern.permute.xlu0 24
  %672 = vperm.xlu0 %671, %v17
  %v673 = vpop.permute.xlu0 %672
  %675 = vset.pattern.permute.xlu0 24
  %676 = vperm.xlu0 %675, %v18
  %v677 = vpop.permute.xlu0 %676
  %v679 = vmul.f32 %v669, %v643
  %v680 = vmul.f32 %v669, %v644
  %v681 = vmul.f32 %v669, %v645
  %v682 = vmul.f32 %v669, %v646
  %v683 = vmul.f32 %v669, %v647
  %v684 = vmul.f32 %v669, %v648
  %v685 = vmul.f32 %v669, %v649
  %v686 = vmul.f32 %v669, %v650
  %v687 = vmul.f32 %v673, %v651
  %v688 = vmul.f32 %v673, %v652
  %v689 = vmul.f32 %v673, %v653
  %v690 = vmul.f32 %v673, %v654
  %v691 = vmul.f32 %v673, %v655
  %v692 = vmul.f32 %v673, %v656
  %v693 = vmul.f32 %v673, %v657
  %v694 = vmul.f32 %v673, %v658
  %v695 = vmul.f32 %v677, %v659
  %v696 = vmul.f32 %v677, %v660
  %v697 = vmul.f32 %v677, %v661
  %v698 = vmul.f32 %v677, %v662
  %v699 = vmul.f32 %v677, %v663
  %v700 = vmul.f32 %v677, %v664
  %v701 = vmul.f32 %v677, %v665
  %v702 = vmul.f32 %v677, %v666
  %v703 = vadd.f32 %v679, %v687
  %v704 = vsel %vm286, %v695, 0.0
  %v705 = vadd.f32 %v703, %v704
  %v706 = vrot.slane %v705, 4
  %v707 = vadd.f32 %v705, %v706
  %v708 = vrot.slane %v707, 2
  %v709 = vadd.f32 %v707, %v708
  %v710 = vrot.slane %v709, 1
  %v711 = vadd.f32 %v709, %v710
  %v712 = vadd.f32 %v680, %v688
  %v713 = vsel %vm286, %v696, 0.0
  %v714 = vadd.f32 %v712, %v713
  %v715 = vrot.slane %v714, 4
  %v716 = vadd.f32 %v714, %v715
  %v717 = vrot.slane %v716, 2
  %v718 = vadd.f32 %v716, %v717
  %v719 = vrot.slane %v718, 1
  %v720 = vadd.f32 %v718, %v719
  %v721 = vadd.f32 %v681, %v689
  %v722 = vsel %vm286, %v697, 0.0
  %v723 = vadd.f32 %v721, %v722
  %v724 = vrot.slane %v723, 4
  %v725 = vadd.f32 %v723, %v724
  %v726 = vrot.slane %v725, 2
  %v727 = vadd.f32 %v725, %v726
  %v728 = vrot.slane %v727, 1
  %v729 = vadd.f32 %v727, %v728
  %v730 = vadd.f32 %v682, %v690
  %v731 = vsel %vm286, %v698, 0.0
  %v732 = vadd.f32 %v730, %v731
  %v733 = vrot.slane %v732, 4
  %v734 = vadd.f32 %v732, %v733
  %v735 = vrot.slane %v734, 2
  %v736 = vadd.f32 %v734, %v735
  %v737 = vrot.slane %v736, 1
  %v738 = vadd.f32 %v736, %v737
  %v739 = vadd.f32 %v683, %v691
  %v740 = vsel %vm286, %v699, 0.0
  %v741 = vadd.f32 %v739, %v740
  %v742 = vrot.slane %v741, 4
  %v743 = vadd.f32 %v741, %v742
  %v744 = vrot.slane %v743, 2
  %v745 = vadd.f32 %v743, %v744
  %v746 = vrot.slane %v745, 1
  %v747 = vadd.f32 %v745, %v746
  %v748 = vadd.f32 %v684, %v692
  %v749 = vsel %vm286, %v700, 0.0
  %v750 = vadd.f32 %v748, %v749
  %v751 = vrot.slane %v750, 4
  %v752 = vadd.f32 %v750, %v751
  %v753 = vrot.slane %v752, 2
  %v754 = vadd.f32 %v752, %v753
  %v755 = vrot.slane %v754, 1
  %v756 = vadd.f32 %v754, %v755
  %v757 = vadd.f32 %v685, %v693
  %v758 = vsel %vm286, %v701, 0.0
  %v759 = vadd.f32 %v757, %v758
  %v760 = vrot.slane %v759, 4
  %v761 = vadd.f32 %v759, %v760
  %v762 = vrot.slane %v761, 2
  %v763 = vadd.f32 %v761, %v762
  %v764 = vrot.slane %v763, 1
  %v765 = vadd.f32 %v763, %v764
  %v766 = vadd.f32 %v686, %v694
  %v767 = vsel %vm286, %v702, 0.0
  %v768 = vadd.f32 %v766, %v767
  %v769 = vrot.slane %v768, 4
  %v770 = vadd.f32 %v768, %v769
  %v771 = vrot.slane %v770, 2
  %v772 = vadd.f32 %v770, %v771
  %v773 = vrot.slane %v772, 1
  %v774 = vadd.f32 %v772, %v773
  %776 = vset.pattern.permute.xlu0 25
  %777 = vperm.xlu0 %776, %v19
  %v778 = vpop.permute.xlu0 %777
  %v780 = vadd.f32 %v711, %v778
  %v781 = vadd.f32 %v720, %v778
  %v782 = vadd.f32 %v729, %v778
  %v783 = vadd.f32 %v738, %v778
  %v784 = vadd.f32 %v747, %v778
  %v785 = vadd.f32 %v756, %v778
  %v786 = vadd.f32 %v765, %v778
  %v787 = vadd.f32 %v774, %v778
  %v796 = vcombine.low %v780, %v781
  %v797 = vcombine.low %v782, %v783
  %v798 = vcombine.low %v784, %v785
  %v799 = vcombine.low %v786, %v787
  %v801 = vunpack.c.l.s4 1966171168
  %v802 = vunpack.c.0.s8 %v801
  %v803 = vlaneseq
  %v804 = vshrl.u32 %v803, 7
  %v805 = vsub.s32 %v802, %v804
  %v806 = vrot.slane %v796, %v805
  %v808 = vunpack.c.l.s4 1966171168
  %v809 = vunpack.c.0.s8 %v808
  %v810 = vlaneseq
  %v811 = vshrl.u32 %v810, 7
  %v812 = vsub.s32 %v809, %v811
  %v813 = vrot.slane %v797, %v812
  %v815 = vunpack.c.l.s4 1966171168
  %v816 = vunpack.c.0.s8 %v815
  %v817 = vlaneseq
  %v818 = vshrl.u32 %v817, 7
  %v819 = vsub.s32 %v816, %v818
  %v820 = vrot.slane %v798, %v819
  %v822 = vunpack.c.l.s4 1966171168
  %v823 = vunpack.c.0.s8 %v822
  %v824 = vlaneseq
  %v825 = vshrl.u32 %v824, 7
  %v826 = vsub.s32 %v823, %v825
  %v827 = vrot.slane %v799, %v826
  %v828 = vcombine.low %v806, %v813
  %v829 = vcombine.low %v820, %v827
  %v831 = vunpack.c.l.s4 1966171168
  %v832 = vunpack.c.0.s8 %v831
  %v833 = vlaneseq
  %v834 = vshrl.u32 %v833, 7
  %v835 = vsub.s32 %v832, %v834
  %v836 = vrot.slane %v828, %v835
  %v838 = vunpack.c.l.s4 1966171168
  %v839 = vunpack.c.0.s8 %v838
  %v840 = vlaneseq
  %v841 = vshrl.u32 %v840, 7
  %v842 = vsub.s32 %v839, %v841
  %v843 = vrot.slane %v829, %v842
  %v844 = vcombine.low %v836, %v843
  %846 = vst [vmem:[%s3] sm:$0xff] %v844
  // Predicated region
  $region14: #{_pinn_forward_impl.1} parent=0 // pred_check
    _
  $region15: #{_pinn_forward_impl.1} parent=0 // pred_check_branch
    %848 = sbr.rel (0) target = $region17
  $region16: #{_pinn_forward_impl.1} parent=0 // pred_region
    _
  $region17: #{_pinn_forward_impl.1} parent=0 // pred_fallthru
    _
  // Predicated region
  $region18: #{_pinn_forward_impl.1} parent=0 // pred_check
    _
  $region19: #{_pinn_forward_impl.1} parent=0 // pred_check_branch
    %850 = sbr.rel (0) target = $region21
  $region20: #{_pinn_forward_impl.1} parent=0 // pred_region
    _
  $region21: #{_pinn_forward_impl.1} parent=0 // pred_fallthru
    _

</llo_original>
